<compile_context>
chip_gen: v5e
topology: v5e:2x2
jax: 0.10.0
libtpu: 0.0.40
codegen_flags: <defaults>
</compile_context>

<pallas_src>
import functools

import jax
import jax.numpy as jnp
from jax import lax
from jax.experimental import pallas as pl
from jax.experimental.pallas import tpu as pltpu


def _round_up(x, m):
    return ((x + m - 1) // m) * m


def _cba_kernel(p_ref, w_ref, scale_ref, bias_ref, o_ref):
    """One grid step = one (batch, spatial-tile) block.

    p_ref:     (1, Kp, TS)   VMEM  bf16   im2col patches (K on sublanes, spatial on lanes)
    w_ref:     (Cp, Kp)      VMEM  bf16   conv weight as a matrix
    scale_ref: (Cp, 1)       VMEM  f32    folded BN scale
    bias_ref:  (Cp, 1)       VMEM  f32    folded BN bias
    o_ref:     (1, Cp, TS)   VMEM  f32    output (spatial lane-dense)
    """
    # Single MXU matmul, f32 accumulation: (Cp, Kp) @ (Kp, TS) -> (Cp, TS)
    acc = jnp.dot(w_ref[...], p_ref[0], preferred_element_type=jnp.float32)
    # BN (folded, inference) + ReLU epilogue in f32 (v5e-friendly).
    y = acc * scale_ref[...] + bias_ref[...]
    o_ref[0] = jnp.maximum(y, 0.0).astype(o_ref.dtype)


def cba_forward(x_nchw, weight, gamma, beta, running_mean, running_var,
                *, stride=1, padding=0, eps=1e-5,
                compute_dtype=jnp.bfloat16):
    """CBAModule forward. x_nchw: (N, Cin, H, W) like PyTorch. Returns NCHW f32."""
    n, c_in, h, w = x_nchw.shape
    c_out, c_in_w, kh, kw = weight.shape
    assert c_in == c_in_w

    # Spatial zero-padding in plain JAX (glue), directly in NCHW.
    if padding:
        x_nchw = jnp.pad(
            x_nchw, ((0, 0), (0, 0), (padding, padding), (padding, padding)))
    hp, wp = x_nchw.shape[2], x_nchw.shape[3]
    h_out = (hp - kh) // stride + 1
    w_out = (wp - kw) // stride + 1
    s = h_out * w_out
    k = kh * kw * c_in

    # --- im2col (transposed): (N, K, Ho*Wo), K index = (i*kw + j)*Cin + c ---
    taps = []
    for i in range(kh):
        for j in range(kw):
            taps.append(
                x_nchw[:, :,
                       i:i + (h_out - 1) * stride + 1:stride,
                       j:j + (w_out - 1) * stride + 1:stride])   # (N, Cin, Ho, Wo)
    patches = jnp.stack(taps, axis=1)          # (N, KH*KW, Cin, Ho, Wo)
    patches = patches.reshape(n, k, s)         # (N, K, S)

    # --- weight: OIHW -> (Cout, K) with the same K ordering ---
    w_mat = jnp.transpose(weight, (0, 2, 3, 1)).reshape(c_out, k)

    # --- fold BN (inference) into per-channel scale / bias (f32) ---
    scale = (gamma / jnp.sqrt(running_var + eps)).astype(jnp.float32)
    bias = (beta - running_mean * scale).astype(jnp.float32)
    scale = scale.reshape(c_out, 1)
    bias = bias.reshape(c_out, 1)

    # --- layout padding: K, Cout to sublane multiples; spatial to lane tiles ---
    k_p = _round_up(k, 8)
    c_p = _round_up(c_out, 8)
    tile_s = min(512, _round_up(s, 128))       # lane-dense spatial tile (>=128)
    s_p = _round_up(s, tile_s)

    if k_p != k:
        patches = jnp.pad(patches, ((0, 0), (0, k_p - k), (0, 0)))
        w_mat = jnp.pad(w_mat, ((0, 0), (0, k_p - k)))
    if c_p != c_out:
        w_mat = jnp.pad(w_mat, ((0, c_p - c_out), (0, 0)))
        scale = jnp.pad(scale, ((0, c_p - c_out), (0, 0)))
        bias = jnp.pad(bias, ((0, c_p - c_out), (0, 0)))
    if s_p != s:
        patches = jnp.pad(patches, ((0, 0), (0, 0), (0, s_p - s)))

    # bf16 MXU inputs; accumulation stays f32 inside the kernel.
    patches = patches.astype(compute_dtype)
    w_mat = w_mat.astype(compute_dtype)

    num_s_tiles = s_p // tile_s
    flops = 2 * n * s_p * k_p * c_p
    bytes_accessed = (patches.size * patches.dtype.itemsize
                      + w_mat.size * w_mat.dtype.itemsize
                      + scale.size * 4 + bias.size * 4
                      + n * c_p * s_p * 4)
    cost = pl.CostEstimate(flops=int(flops), transcendentals=0,
                           bytes_accessed=int(bytes_accessed))

    # NOTE: w_mat / scale / bias have constant index_maps; at these sizes the
    # redundant double-buffer is a few KiB. TODO(synk): for production channel
    # counts, single-buffer them (pl.Buffered(1)) or hoist into scratch.
    out = pl.pallas_call(
        _cba_kernel,
        out_shape=jax.ShapeDtypeStruct((n, c_p, s_p), jnp.float32),
        grid_spec=pltpu.PrefetchScalarGridSpec(
            num_scalar_prefetch=0,
            grid=(n, num_s_tiles),
            in_specs=[
                pl.BlockSpec((1, k_p, tile_s), lambda b, si: (b, 0, si)),
                pl.BlockSpec((c_p, k_p), lambda b, si: (0, 0)),
                pl.BlockSpec((c_p, 1), lambda b, si: (0, 0)),
                pl.BlockSpec((c_p, 1), lambda b, si: (0, 0)),
            ],
            out_specs=pl.BlockSpec((1, c_p, tile_s), lambda b, si: (b, 0, si)),
        ),
        compiler_params=pltpu.CompilerParams(
            dimension_semantics=("parallel", "parallel")),
        cost_estimate=cost,
    )(patches, w_mat, scale, bias)

    # Slice off channel/spatial padding and reshape; no transpose needed — the
    # kernel already writes in (N, Cout, spatial) = NCHW order.
    return out[:, :c_out, :s].reshape(n, c_out, h_out, w_out)


def _reference(x_nchw, weight, gamma, beta, running_mean, running_var,
               *, stride=1, padding=0, eps=1e-5, compute_dtype=jnp.float32):
    """Pure-JAX reference (lax conv + BN + ReLU) in NCHW.

    `compute_dtype` quantizes conv inputs the same way the kernel does
    (bf16 operands, f32 accumulate), so comparisons stay tight."""
    xq = x_nchw.astype(compute_dtype).astype(jnp.float32)
    wq = weight.astype(compute_dtype).astype(jnp.float32)
    y = lax.conv_general_dilated(
        xq, wq,
        window_strides=(stride, stride),
        padding=[(padding, padding), (padding, padding)],
        dimension_numbers=("NCHW", "OIHW", "NCHW"))
    scale = gamma / jnp.sqrt(running_var + eps)
    bias = beta - running_mean * scale
    y = y * scale[None, :, None, None] + bias[None, :, None, None]
    return jnp.maximum(y, 0.0)


if __name__ == "__main__":
    key = jax.random.PRNGKey(0)
    k_x, k_w, k_g, k_b, k_m, k_v = jax.random.split(key, 6)

    # CBAModule(in_channels=4, out_channels=24, kernel_size=3, stride=1, padding=0)
    N, C_IN, H, W = 2, 4, 16, 16
    C_OUT, K = 24, 3

    x = jax.random.normal(k_x, (N, C_IN, H, W), dtype=jnp.float32)
    weight = jax.random.normal(k_w, (C_OUT, C_IN, K, K), dtype=jnp.float32) * 0.1
    gamma = jax.random.uniform(k_g, (C_OUT,), minval=0.5, maxval=1.5)
    beta = jax.random.normal(k_b, (C_OUT,)) * 0.1
    running_mean = jax.random.normal(k_m, (C_OUT,)) * 0.1
    running_var = jax.random.uniform(k_v, (C_OUT,), minval=0.5, maxval=1.5)

    fwd = jax.jit(functools.partial(cba_forward, stride=1, padding=0))
    out = fwd(x, weight, gamma, beta, running_mean, running_var)
    out = jax.block_until_ready(out)

    # Reference with the same bf16 operand quantization (f32 accumulate).
    ref = _reference(x, weight, gamma, beta, running_mean, running_var,
                     stride=1, padding=0, compute_dtype=jnp.bfloat16)

    assert out.shape == (N, C_OUT, H - K + 1, W - K + 1), out.shape
    max_err = float(jnp.max(jnp.abs(out - ref)))
    assert jnp.allclose(out, ref, atol=2e-3, rtol=2e-3), max_err

    print("KERNEL_OK")
</pallas_src>

<mosaic_0001>
module attributes {stable_mosaic.version = 11 : i64} {
  func.func @_cba_kernel(%arg0: i32, %arg1: i32, %arg2: memref<1x40x256xbf16, #tpu.memory_space<vmem>>, %arg3: memref<24x40xbf16, #tpu.memory_space<vmem>>, %arg4: memref<24x1xf32, #tpu.memory_space<vmem>>, %arg5: memref<24x1xf32, #tpu.memory_space<vmem>>, %arg6: memref<1x24x256xf32, #tpu.memory_space<vmem>>) attributes {dimension_semantics = [#tpu.dimension_semantics<parallel>, #tpu.dimension_semantics<parallel>], iteration_bounds = array<i64: 2, 1>, scalar_prefetch = 0 : i64, scratch_operands = 0 : i64, tpu.core_type = #tpu.core_type<tc>, window_params = [{transform_indices = @transform_0, window_bounds = array<i64: 1, 40, 256>}, {pipeline_mode = #tpu.pipeline_mode<synchronous>, transform_indices = @transform_1, window_bounds = array<i64: 24, 40>}, {pipeline_mode = #tpu.pipeline_mode<synchronous>, transform_indices = @transform_2, window_bounds = array<i64: 24, 1>}, {pipeline_mode = #tpu.pipeline_mode<synchronous>, transform_indices = @transform_3, window_bounds = array<i64: 24, 1>}, {transform_indices = @transform_4, window_bounds = array<i64: 1, 24, 256>}]} {
    %c0 = arith.constant 0 : index
    %c0_0 = arith.constant 0 : index
    %0 = vector.load %arg3[%c0, %c0_0] : memref<24x40xbf16, #tpu.memory_space<vmem>>, vector<24x40xbf16>
    %c0_1 = arith.constant 0 : index
    %c0_2 = arith.constant 0 : index
    %c0_3 = arith.constant 0 : index
    %1 = vector.load %arg2[%c0_1, %c0_2, %c0_3] : memref<1x40x256xbf16, #tpu.memory_space<vmem>>, vector<1x40x256xbf16>
    %2 = vector.shape_cast %1 : vector<1x40x256xbf16> to vector<40x256xbf16>
    %cst = arith.constant dense<0.000000e+00> : vector<24x256xf32>
    %3 = tpu.matmul %0, %2, %cst {dimension_numbers = #tpu.dot_dimension_numbers<[1], [0], [0], [1], [0, 0, 1, 1], [], []>} : vector<24x40xbf16>, vector<40x256xbf16>, vector<24x256xf32> -> vector<24x256xf32>
    %c0_4 = arith.constant 0 : index
    %c0_5 = arith.constant 0 : index
    %4 = vector.load %arg4[%c0_4, %c0_5] : memref<24x1xf32, #tpu.memory_space<vmem>>, vector<24x1xf32>
    %5 = vector.broadcast %4 : vector<24x1xf32> to vector<24x256xf32>
    %6 = arith.mulf %3, %5 : vector<24x256xf32>
    %c0_6 = arith.constant 0 : index
    %c0_7 = arith.constant 0 : index
    %7 = vector.load %arg5[%c0_6, %c0_7] : memref<24x1xf32, #tpu.memory_space<vmem>>, vector<24x1xf32>
    %8 = vector.broadcast %7 : vector<24x1xf32> to vector<24x256xf32>
    %9 = arith.addf %6, %8 : vector<24x256xf32>
    %cst_8 = arith.constant 0.000000e+00 : f32
    %10 = vector.broadcast %cst_8 : f32 to vector<24x256xf32>
    %11 = arith.maximumf %9, %10 : vector<24x256xf32>
    %c0_9 = arith.constant 0 : index
    %c0_10 = arith.constant 0 : index
    %c0_11 = arith.constant 0 : index
    %12 = vector.load %arg6[%c0_9, %c0_10, %c0_11] : memref<1x24x256xf32, #tpu.memory_space<vmem>>, vector<1x24x256xf32>
    %13 = vector.shape_cast %12 : vector<1x24x256xf32> to vector<24x256xf32>
    %14 = vector.shape_cast %11 : vector<24x256xf32> to vector<1x24x256xf32>
    tpu.vector_store %arg6[%c0_9, %c0_10, %c0_11], %14 {strides = array<i32>} : memref<1x24x256xf32, #tpu.memory_space<vmem>>, vector<1x24x256xf32>,
    return
  }
  func.func @transform_0(%arg0: i32, %arg1: i32) -> (i32, i32, i32) {
    %c0_i32 = arith.constant 0 : i32
    %c0_i32_0 = arith.constant 0 : i32
    return %arg0, %c0_i32, %arg1 : i32, i32, i32
  }
  func.func @transform_1(%arg0: i32, %arg1: i32) -> (i32, i32) {
    %c0_i32 = arith.constant 0 : i32
    %c0_i32_0 = arith.constant 0 : i32
    %c0_i32_1 = arith.constant 0 : i32
    return %c0_i32, %c0_i32_0 : i32, i32
  }
  func.func @transform_2(%arg0: i32, %arg1: i32) -> (i32, i32) {
    %c0_i32 = arith.constant 0 : i32
    %c0_i32_0 = arith.constant 0 : i32
    %c0_i32_1 = arith.constant 0 : i32
    return %c0_i32, %c0_i32_0 : i32, i32
  }
  func.func @transform_3(%arg0: i32, %arg1: i32) -> (i32, i32) {
    %c0_i32 = arith.constant 0 : i32
    %c0_i32_0 = arith.constant 0 : i32
    %c0_i32_1 = arith.constant 0 : i32
    return %c0_i32, %c0_i32_0 : i32, i32
  }
  func.func @transform_4(%arg0: i32, %arg1: i32) -> (i32, i32, i32) {
    %c0_i32 = arith.constant 0 : i32
    %c0_i32_0 = arith.constant 0 : i32
    return %arg0, %c0_i32, %arg1 : i32, i32, i32
  }
}

</mosaic_0001>

<llo_original>
// kernel: cba_forward.1
$region0: #{cba_forward.1}
  #allocation0 [shape = 'u32[]', space=smem, size = 0x4, offset = 0x4, fixed_abs, tag = 'smem constant byte address 0x4 - core index']
  #allocation1 [shape = 'u32[72,128]{1,0:T(1,128)}', space=vmem, size = 0x9000, scoped, tag = 'internal scratch']
  %s0 = inlined_call_operand.vmem [shape: bf16[2,40,256], index: 0, kind: input, shape index: {}]
  %s1 = inlined_call_operand.vmem [shape: bf16[24,40], index: 1, kind: input, shape index: {}]
  %s2 = inlined_call_operand.vmem [shape: f32[24,1], index: 2, kind: input, shape index: {}]
  %s3 = inlined_call_operand.vmem [shape: f32[24,1], index: 3, kind: input, shape index: {}]
  %s4 = inlined_call_operand.vmem [shape: f32[2,24,256], index: 4, kind: output, shape index: {}]
  %s5 = sld [smem:[#allocation0]]
  $region49: #{cba_forward.1} parent=0
    _
  %s7 = ssub.s32 1, %s5
  %s8 = scalar_select 0, %s7, %s5
  loop: start=0, step=1, limit=4
  $region2: #{cba_forward.1} parent=0 // loop_pre_header
    _
  $region3: #{cba_forward.1} parent=0 // loop_header
    %s10 = sphi 0, %s14
    %p11 = scmp.ge.s32.totalorder %s10, 4
    %s17 = sphi 0, %s29
    %s18 = sphi 0, %s25
    %s19 = sphi 0, %s17
    %s20 = sphi 0, %s18
    %s21 = sphi 0, %s19
    %s22 = sphi 0, %s20
    %s34 = sphi 0, %s36
    %s37 = sphi 0, %s34
    %s38 = sphi 0, %s37
    %s54 = sphi 0, %s38
    %s58 = sphi 0, %s58
    %s60 = sphi 0, %s58
    %s61 = sphi 0, %s60
    %s75 = sphi 0, %s61
    %s79 = sphi 0, %s79
    %s81 = sphi 0, %s79
    %s82 = sphi 0, %s81
    %s96 = sphi 0, %s82
    %s100 = sphi 0, %s100
    %s102 = sphi 0, %s100
    %s103 = sphi 0, %s102
    %s117 = sphi 0, %s103
    %s125 = sphi 0, %s127
    %s128 = sphi 0, %s125
    %s129 = sphi 0, %s128
    %s145 = sphi 0, %s129
  $region4: #{cba_forward.1} parent=0 // loop_header_branch
    %13 = sbr.rel (%p11) target = $region8
  $region5: #{cba_forward.1} parent=0 // loop_body
    %s15 = ssub.s32 %s10, 1
    %s16 = ssub.s32 %s10, 2
    %s23 = sadd.s32 1, %s18
    %p24 = scmp.ge.s32.totalorder %s23, 1
    %s25 = scalar_select %p24, 0, %s23
    %s26 = sadd.s32 1, %s17
    %s27 = scalar_select %p24, %s26, %s17
    %p28 = scmp.ge.s32.totalorder %s27, 2
    %s29 = scalar_select %p28, 0, %s27
    %s30 = ssub.s32 %s17, %s29
    %s31 = ssub.s32 %s18, %s25
    %s32 = sor.u32 %s30, %s31
    %p33 = scmp.eq.s32.totalorder %s32, 0
    %s35 = sadd.s32 %s34, 1
    %s36 = scalar_select %p33, %s34, %s35
    %p39 = pneg %p33
    %p40 = scmp.eq.s32.totalorder %s10, 1
    %p41 = por %p39, %p40
    %p42 = scmp.ne.s32.totalorder %s34, %s37
    %p43 = scmp.eq.s32.totalorder %s10, 0
    %p44 = por %p42, %p43
    %p45 = scmp.ne.s32.totalorder %s34, %s37
    %p46 = scmp.eq.s32.totalorder %s15, 1
    %p47 = por %p45, %p46
    %p48 = scmp.ne.s32.totalorder %s37, %s38
    %p49 = scmp.eq.s32.totalorder %s15, 0
    %p50 = por %p48, %p49
    %p51 = scmp.ne.s32.totalorder %s37, %s38
    %p52 = scmp.eq.s32.totalorder %s16, 1
    %p53 = por %p51, %p52
    %p55 = scmp.ne.s32.totalorder %s38, %s54
    %p56 = scmp.eq.s32.totalorder %s16, 0
    %p57 = por %p55, %p56
    %s59 = sadd.s32 %s58, 1
    %p62 = scmp.eq.s32.totalorder %s10, 1
    %p63 = scmp.ne.s32.totalorder %s58, %s60
    %p64 = scmp.eq.s32.totalorder %s10, 0
    %p65 = por %p63, %p64
    %p66 = scmp.ne.s32.totalorder %s58, %s60
    %p67 = scmp.eq.s32.totalorder %s15, 1
    %p68 = por %p66, %p67
    %p69 = scmp.ne.s32.totalorder %s60, %s61
    %p70 = scmp.eq.s32.totalorder %s15, 0
    %p71 = por %p69, %p70
    %p72 = scmp.ne.s32.totalorder %s60, %s61
    %p73 = scmp.eq.s32.totalorder %s16, 1
    %p74 = por %p72, %p73
    %p76 = scmp.ne.s32.totalorder %s61, %s75
    %p77 = scmp.eq.s32.totalorder %s16, 0
    %p78 = por %p76, %p77
    %s80 = sadd.s32 %s79, 1
    %p83 = scmp.eq.s32.totalorder %s10, 1
    %p84 = scmp.ne.s32.totalorder %s79, %s81
    %p85 = scmp.eq.s32.totalorder %s10, 0
    %p86 = por %p84, %p85
    %p87 = scmp.ne.s32.totalorder %s79, %s81
    %p88 = scmp.eq.s32.totalorder %s15, 1
    %p89 = por %p87, %p88
    %p90 = scmp.ne.s32.totalorder %s81, %s82
    %p91 = scmp.eq.s32.totalorder %s15, 0
    %p92 = por %p90, %p91
    %p93 = scmp.ne.s32.totalorder %s81, %s82
    %p94 = scmp.eq.s32.totalorder %s16, 1
    %p95 = por %p93, %p94
    %p97 = scmp.ne.s32.totalorder %s82, %s96
    %p98 = scmp.eq.s32.totalorder %s16, 0
    %p99 = por %p97, %p98
    %s101 = sadd.s32 %s100, 1
    %p104 = scmp.eq.s32.totalorder %s10, 1
    %p105 = scmp.ne.s32.totalorder %s100, %s102
    %p106 = scmp.eq.s32.totalorder %s10, 0
    %p107 = por %p105, %p106
    %p108 = scmp.ne.s32.totalorder %s100, %s102
    %p109 = scmp.eq.s32.totalorder %s15, 1
    %p110 = por %p108, %p109
    %p111 = scmp.ne.s32.totalorder %s102, %s103
    %p112 = scmp.eq.s32.totalorder %s15, 0
    %p113 = por %p111, %p112
    %p114 = scmp.ne.s32.totalorder %s102, %s103
    %p115 = scmp.eq.s32.totalorder %s16, 1
    %p116 = por %p114, %p115
    %p118 = scmp.ne.s32.totalorder %s103, %s117
    %p119 = scmp.eq.s32.totalorder %s16, 0
    %p120 = por %p118, %p119
    %s121 = ssub.s32 %s17, %s29
    %s122 = ssub.s32 %s18, %s25
    %s123 = sor.u32 %s121, %s122
    %p124 = scmp.eq.s32.totalorder %s123, 0
    %s126 = sadd.s32 %s125, 1
    %s127 = scalar_select %p124, %s125, %s126
    %p130 = pneg %p124
    %p131 = scmp.eq.s32.totalorder %s10, 1
    %p132 = por %p130, %p131
    %p133 = scmp.ne.s32.totalorder %s125, %s128
    %p134 = scmp.eq.s32.totalorder %s10, 0
    %p135 = por %p133, %p134
    %p136 = scmp.ne.s32.totalorder %s125, %s128
    %p137 = scmp.eq.s32.totalorder %s15, 1
    %p138 = por %p136, %p137
    %p139 = scmp.ne.s32.totalorder %s128, %s129
    %p140 = scmp.eq.s32.totalorder %s15, 0
    %p141 = por %p139, %p140
    %p142 = scmp.ne.s32.totalorder %s128, %s129
    %p143 = scmp.eq.s32.totalorder %s16, 1
    %p144 = por %p142, %p143
    %p146 = scmp.ne.s32.totalorder %s129, %s145
    %p147 = scmp.eq.s32.totalorder %s16, 0
    %p148 = por %p146, %p147
    %p149 = scmp.le.s32.totalorder 1, %s10
    %p150 = scmp.lt.s32.totalorder %s10, 3
    %p151 = pnand %p149, %p150
    %p152 = pneg %p151
    // Predicated region
    $region9: #{cba_forward.1} parent=5 // pred_check
      _
    $region10: #{cba_forward.1} parent=5 // pred_check_branch
      %154 = sbr.rel (%p151) target = $region12
    $region11: #{cba_forward.1} parent=5 // pred_region
      %s155 = ssub.s32 %s10, 1
      // Predicated region
      $region13: #{cba_forward.1} parent=11 // pred_check
        %p156 = pneg %p71
      $region14: #{cba_forward.1} parent=11 // pred_check_branch
        %158 = sbr.rel (%p156) target = $region16
      $region15: #{cba_forward.1} parent=11 // pred_region
        _
      $region16: #{cba_forward.1} parent=11 // pred_fallthru
        _
      // Predicated region
      $region17: #{cba_forward.1} parent=11 // pred_check
        %p159 = pneg %p92
      $region18: #{cba_forward.1} parent=11 // pred_check_branch
        %161 = sbr.rel (%p159) target = $region20
      $region19: #{cba_forward.1} parent=11 // pred_region
        _
      $region20: #{cba_forward.1} parent=11 // pred_fallthru
        _
      // Predicated region
      $region21: #{cba_forward.1} parent=11 // pred_check
        %p162 = pneg %p113
      $region22: #{cba_forward.1} parent=11 // pred_check_branch
        %164 = sbr.rel (%p162) target = $region24
      $region23: #{cba_forward.1} parent=11 // pred_region
        _
      $region24: #{cba_forward.1} parent=11 // pred_fallthru
        _
    $region12: #{cba_forward.1} parent=5 // pred_fallthru
      _
    %p165 = scmp.lt.s32.totalorder %s10, 2
    // Predicated region
    $region25: #{cba_forward.1} parent=5 // pred_check
      %p166 = pneg %p165
    $region26: #{cba_forward.1} parent=5 // pred_check_branch
      %168 = sbr.rel (%p166) target = $region28
    $region27: #{cba_forward.1} parent=5 // pred_region
      // Predicated region
      $region29: #{cba_forward.1} parent=27 // pred_check
        %p169 = pneg %p44
      $region30: #{cba_forward.1} parent=27 // pred_check_branch
        %171 = sbr.rel (%p169) target = $region32
      $region31: #{cba_forward.1} parent=27 // pred_region
        %s172 = smul.u32 2, %s18
        %p173 = scmp.lt.s32.totalorder %s17, 1
        %s174 = scalar_select %p173, %s17, 1
        %p175 = scmp.lt.s32.totalorder %s172, 1
        %s176 = scalar_select %p175, %s172, 1
        %s177 = smul.addr %s174, 10
        %s178 = sadd.s32 %s176, %s177
        %s179 = smul.addr %s178, 4
        %s180 = scalar_lea.vmem %s0, %s179
        %s181 = smul.u32 2, %s18
      $region32: #{cba_forward.1} parent=27 // pred_fallthru
        _
    $region28: #{cba_forward.1} parent=5 // pred_fallthru
      _
    %p182 = scmp.le.s32.totalorder 1, %s10
    %p183 = scmp.lt.s32.totalorder %s10, 3
    %p184 = pnand %p182, %p183
    %p185 = pneg %p184
    // Predicated region
    $region33: #{cba_forward.1} parent=5 // pred_check
      _
    $region34: #{cba_forward.1} parent=5 // pred_check_branch
      %187 = sbr.rel (%p184) target = $region36
    $region35: #{cba_forward.1} parent=5 // pred_region
      %s188 = ssub.s32 %s10, 1
      %s189 = smul.u32 2, %s20
      %p190 = scmp.lt.s32.totalorder %s19, 1
      %s191 = scalar_select %p190, %s19, 1
      %p192 = scmp.lt.s32.totalorder %s189, 1
      %s193 = scalar_select %p192, %s189, 1
      %s194 = smul.addr %s191, 10
      %s195 = sadd.s32 %s193, %s194
      %s196 = smul.addr %s195, 4
      %s197 = scalar_lea.vmem %s0, %s196
      %p198 = pneg %p50
      %p199 = pneg %p47
      %p200 = pneg %p71
      %p201 = pneg %p68
      %p202 = pneg %p92
      %p203 = pneg %p89
      %p204 = pneg %p113
      %p205 = pneg %p110
      %p206 = pneg %p141
      %p207 = pneg %p138
      %s208 = smul.u32 2, %s20
      %p209 = scmp.lt.s32.totalorder %s19, 1
      %s210 = scalar_select %p209, %s19, 1
      %p211 = scmp.lt.s32.totalorder %s208, 1
      %s212 = scalar_select %p211, %s208, 1
      %s213 = smul.addr %s210, 6
      %s214 = sadd.s32 %s212, %s213
      %s215 = smul.addr %s214, 8
      %s216 = scalar_lea.vmem %s4, %s215
      %s217 = smul.u32 2, %s20
      %p218 = scmp.lt.s32.totalorder %s19, 1
      %s219 = scalar_select %p218, %s19, 1
      %p220 = scmp.lt.s32.totalorder %s217, 1
      %s221 = scalar_select %p220, %s217, 1
      %s222 = smul.addr %s219, 10
      %s223 = sadd.s32 %s221, %s222
      %s224 = smul.addr %s223, 4
      %s225 = scalar_lea.vmem %s0, %s224
      %s226 = smul.u32 2, %s20
      %s227 = smul.u32 2, %s20
      %p228 = scmp.lt.s32.totalorder %s19, 1
      %s229 = scalar_select %p228, %s19, 1
      %p230 = scmp.lt.s32.totalorder %s227, 1
      %s231 = scalar_select %p230, %s227, 1
      %s232 = smul.addr %s229, 6
      %s233 = sadd.s32 %s231, %s232
      %s234 = smul.addr %s233, 8
      %s235 = scalar_lea.vmem %s4, %s234
      %s236 = smul.u32 2, %s20
      %v238 = vld [vmem:[%s1] sm:$0xf]
      %v239 = vld [vmem:[%s1 + $0x4] sm:$0xf]
      %v240 = vld [vmem:[%s1 + $0x8] sm:$0xf]
      %v241 = vld [vmem:[%s225] sm:$0xff]
      %v242 = vld [vmem:[%s225 + $0x8] sm:$0xff]
      %v243 = vld [vmem:[%s225 + $0x10] sm:$0xff]
      %v244 = vld [vmem:[%s225 + $0x18] sm:$0xff]
      %v245 = vld [vmem:[%s225 + $0x20] sm:$0xff]
      %v249 = vunpack.c.l.b16 %v238
      %v250 = vunpack.c.l.b16 %v239
      %v251 = vunpack.c.l.b16 %v240
      %v252 = vpack.c.b16 %v250, %v249
      %v253 = vpack.c.b16 %v251, %v251
      %v259 = vunpack.c.l.b16 %v241
      %v260 = vunpack.c.h.b16 %v241
      %v261 = vunpack.c.l.b16 %v242
      %v262 = vunpack.c.h.b16 %v242
      %v263 = vunpack.c.l.b16 %v243
      %v264 = vunpack.c.h.b16 %v243
      %v265 = vunpack.c.l.b16 %v244
      %v266 = vunpack.c.h.b16 %v244
      %v267 = vunpack.c.l.b16 %v245
      %v268 = vunpack.c.h.b16 %v245
      %v269 = vpack.c.b16 %v261, %v259
      %v270 = vpack.c.b16 %v262, %v260
      %v271 = vpack.c.b16 %v265, %v263
      %v272 = vpack.c.b16 %v266, %v264
      %v273 = vpack.c.b16 %v267, %v267
      %v274 = vpack.c.b16 %v268, %v268
      %vm279 = vcmask 326656
      %v281 = vsel %vm279, %v252, 0
      %v284 = vsel %vm279, %v253, 0
      %vm286 = vcmask 1043456
      %v288 = vsel %vm286, %v273, 0
      %v291 = vsel %vm286, %v274, 0
      %293 = vmatpush.bf16.msra.mxu0 0
      %294 = vmatpush.bf16.msra.mxu0 0
      %295 = vmatpush.bf16.msra.mxu0 0
      %296 = vmatpush.bf16.msra.mxu0 0
      %297 = vmatpush.bf16.msra.mxu0 0
      %298 = vmatpush.bf16.msra.mxu0 %v288
      %299 = vmatpush.bf16.msra.mxu0 %v271
      %300 = vmatpush.bf16.msra.mxu0 %v269
      %301 = vmatmul.bf16.gmra.mxu0 %v281
      %v302 = vpop.f32.mrf.mxu0
      %v303 = vadd.f32 0.0, %v302
      %v304 = vpop.f32.mrf.mxu0
      %v305 = vadd.f32 0.0, %v304
      %306 = vmatmul.bf16.gmra.mxu0 %v284
      %v307 = vpop.f32.mrf.mxu0
      %v308 = vadd.f32 0.0, %v307
      %v309 = vpop.f32.mrf.mxu0
      %310 = vdwg.mxu0
      %311 = vmatpush.bf16.msra.mxu0 0
      %312 = vmatpush.bf16.msra.mxu0 0
      %313 = vmatpush.bf16.msra.mxu0 0
      %314 = vmatpush.bf16.msra.mxu0 0
      %315 = vmatpush.bf16.msra.mxu0 0
      %316 = vmatpush.bf16.msra.mxu0 %v291
      %317 = vmatpush.bf16.msra.mxu0 %v272
      %318 = vmatpush.bf16.msra.mxu0 %v270
      %319 = vmatmul.bf16.gmra.mxu0 %v281
      %v320 = vpop.f32.mrf.mxu0
      %v321 = vadd.f32 0.0, %v320
      %v322 = vpop.f32.mrf.mxu0
      %v323 = vadd.f32 0.0, %v322
      %324 = vmatmul.bf16.gmra.mxu0 %v284
      %v325 = vpop.f32.mrf.mxu0
      %v326 = vadd.f32 0.0, %v325
      %v327 = vpop.f32.mrf.mxu0
      %328 = vdwg.mxu0
      %v329 = vld [vmem:[%s2] sm:$0xff]
      %v330 = vld [vmem:[%s2 + $0x8] sm:$0xff]
      %v331 = vld [vmem:[%s2 + $0x10] sm:$0xff]
      %333 = vset.pattern.permute.xlu0 0
      %334 = vperm.xlu0 %333, %v329
      %v335 = vpop.permute.xlu0 %334
      %338 = vset.pattern.permute.xlu0 0
      %339 = vperm.xlu0 %338, %v330
      %v340 = vpop.permute.xlu0 %339
      %343 = vset.pattern.permute.xlu0 0
      %344 = vperm.xlu0 %343, %v331
      %v345 = vpop.permute.xlu0 %344
      %v347 = vmul.f32 %v303, %v335
      %v348 = vmul.f32 %v321, %v335
      %v349 = vmul.f32 %v305, %v340
      %v350 = vmul.f32 %v323, %v340
      %v351 = vmul.f32 %v308, %v345
      %v352 = vmul.f32 %v326, %v345
      %v353 = vld [vmem:[%s3] sm:$0xff]
      %v354 = vld [vmem:[%s3 + $0x8] sm:$0xff]
      %v355 = vld [vmem:[%s3 + $0x10] sm:$0xff]
      %357 = vset.pattern.permute.xlu0 0
      %358 = vperm.xlu0 %357, %v353
      %v359 = vpop.permute.xlu0 %358
      %362 = vset.pattern.permute.xlu0 0
      %363 = vperm.xlu0 %362, %v354
      %v364 = vpop.permute.xlu0 %363
      %367 = vset.pattern.permute.xlu0 0
      %368 = vperm.xlu0 %367, %v355
      %v369 = vpop.permute.xlu0 %368
      %v371 = vadd.f32 %v347, %v359
      %v372 = vadd.f32 %v348, %v359
      %v373 = vadd.f32 %v349, %v364
      %v374 = vadd.f32 %v350, %v364
      %v375 = vadd.f32 %v351, %v369
      %v376 = vadd.f32 %v352, %v369
      %v377 = vmax.f32 %v371, 0.0
      %v378 = vmax.f32 %v372, 0.0
      %v379 = vmax.f32 %v373, 0.0
      %v380 = vmax.f32 %v374, 0.0
      %v381 = vmax.f32 %v375, 0.0
      %v382 = vmax.f32 %v376, 0.0
      %383 = vst [vmem:[%s235] sm:$0xff] %v377
      %384 = vst [vmem:[%s235 + $0x8] sm:$0xff] %v378
      %385 = vst [vmem:[%s235 + $0x10] sm:$0xff] %v379
      %386 = vst [vmem:[%s235 + $0x18] sm:$0xff] %v380
      %387 = vst [vmem:[%s235 + $0x20] sm:$0xff] %v381
      %388 = vst [vmem:[%s235 + $0x28] sm:$0xff] %v382
      %s389 = smul.u32 2, %s20
      %p390 = scmp.lt.s32.totalorder %s19, 1
      %s391 = scalar_select %p390, %s19, 1
      %p392 = scmp.lt.s32.totalorder %s389, 1
      %s393 = scalar_select %p392, %s389, 1
      %s394 = smul.addr %s391, 6
      %s395 = sadd.s32 %s393, %s394
      %s396 = smul.addr %s395, 8
      %s397 = scalar_lea.vmem %s4, %s396
      // Predicated region
      $region37: #{cba_forward.1} parent=35 // pred_check
        %p398 = pneg %p138
      $region38: #{cba_forward.1} parent=35 // pred_check_branch
        %400 = sbr.rel (%p398) target = $region40
      $region39: #{cba_forward.1} parent=35 // pred_region
        %s401 = smul.u32 2, %s20
      $region40: #{cba_forward.1} parent=35 // pred_fallthru
        _
    $region36: #{cba_forward.1} parent=5 // pred_fallthru
      _
    %p402 = scmp.le.s32.totalorder 2, %s10
    // Predicated region
    $region41: #{cba_forward.1} parent=5 // pred_check
      %p403 = pneg %p402
    $region42: #{cba_forward.1} parent=5 // pred_check_branch
      %405 = sbr.rel (%p403) target = $region44
    $region43: #{cba_forward.1} parent=5 // pred_region
      %s406 = ssub.s32 %s10, 2
      // Predicated region
      $region45: #{cba_forward.1} parent=43 // pred_check
        %p407 = pneg %p144
      $region46: #{cba_forward.1} parent=43 // pred_check_branch
        %409 = sbr.rel (%p407) target = $region48
      $region47: #{cba_forward.1} parent=43 // pred_region
        %s410 = smul.u32 2, %s22
        %p411 = scmp.lt.s32.totalorder %s21, 1
        %s412 = scalar_select %p411, %s21, 1
        %p413 = scmp.lt.s32.totalorder %s410, 1
        %s414 = scalar_select %p413, %s410, 1
        %s415 = smul.addr %s412, 6
        %s416 = sadd.s32 %s414, %s415
        %s417 = smul.addr %s416, 8
        %s418 = scalar_lea.vmem %s4, %s417
      $region48: #{cba_forward.1} parent=43 // pred_fallthru
        _
    $region44: #{cba_forward.1} parent=5 // pred_fallthru
      _
  $region6: #{cba_forward.1} parent=0 // loop_footer
    %s14 = sadd.s32 1, %s10
  $region7: #{cba_forward.1} parent=0 // loop_footer_branch
    %9 = sbr.rel target = $region3
  $region8: #{cba_forward.1} parent=0 // loop_exit
    _

</llo_original>
